<compile_context>
chip_gen: v5e
topology: v5e:2x2
jax: 0.10.0
libtpu: 0.0.40
codegen_flags: <defaults>
</compile_context>

<pallas_src>
import jax
import jax.numpy as jnp
from jax.experimental import pallas as pl
from jax.experimental.pallas import tpu as pltpu


def _hard_sample_loss_kernel(n_ref, u_ref, logits_ref, soft_ref, w_ref,
                             out_ref, acc_wnll_ref, acc_w_ref):
    i = pl.program_id(0)
    tn, c = logits_ref.shape

    @pl.when(i == 0)
    def _init():
        acc_wnll_ref[...] = jnp.zeros_like(acc_wnll_ref)
        acc_w_ref[...] = jnp.zeros_like(acc_w_ref)

    soft = soft_ref[...].astype(jnp.float32)            # (tn, c)
    u = u_ref[...].astype(jnp.float32)                  # (tn, 1), U[0, 1)

    # ---- multinomial sampling via inverse CDF --------------------------------
    # Inclusive prefix sum along the class (lane) axis: Hillis-Steele scan with
    # zero-filled shifts.  O(c log c) elementwise work, no (c, c) buffer.
    cs = soft
    k = 1
    while k < c:
        shifted = jnp.concatenate(
            [jnp.zeros((tn, k), jnp.float32), cs[:, :c - k]], axis=-1)
        cs = cs + shifted
        k *= 2

    total = cs[:, c - 1:c]                               # (tn, 1) same reduction order as cs
    thr = u * total                                      # in [0, total)
    t = jnp.sum((cs <= thr).astype(jnp.int32), axis=-1, keepdims=True)  # (tn, 1)
    t = jnp.minimum(t, c - 1)                            # clamp against rounding edge

    lane = jax.lax.broadcasted_iota(jnp.int32, (tn, c), 1)
    onehot = lane == t                                   # (tn, c) bool, int compare

    # ---- cross entropy (weighted mean, matching F.cross_entropy) -------------
    logits = logits_ref[...].astype(jnp.float32)
    m = jnp.max(logits, axis=-1, keepdims=True)
    lse = jnp.log(jnp.sum(jnp.exp(logits - m), axis=-1, keepdims=True)) + m
    picked = jnp.sum(jnp.where(onehot, logits, 0.0), axis=-1, keepdims=True)
    nll = lse - picked                                   # (tn, 1)
    w = jnp.sum(jnp.where(onehot, w_ref[...].astype(jnp.float32), 0.0),
                axis=-1, keepdims=True)                  # (tn, 1)

    # mask out padded tail rows (row index >= true N)
    row = i * tn + jax.lax.broadcasted_iota(jnp.int32, (tn, 1), 0)
    wv = jnp.where(row < n_ref[0], w, 0.0)

    acc_wnll_ref[...] += jnp.sum(wv * nll, axis=0, keepdims=True)
    acc_w_ref[...] += jnp.sum(wv, axis=0, keepdims=True)

    @pl.when(i == pl.num_programs(0) - 1)
    def _finalize():
        out_ref[...] = acc_wnll_ref[...] / acc_w_ref[...]


def _round_up(x, m):
    return (x + m - 1) // m * m


def hard_sample_loss(logits, soft_labels, class_weights=None, *, key=None):
    """logits, soft_labels: (N, C). class_weights: (C,) or None. Returns scalar loss."""
    n, c = logits.shape
    if key is None:
        key = jax.random.PRNGKey(0)
    if class_weights is None:
        class_weights = jnp.ones((c,), jnp.float32)
    w2d = class_weights.reshape(1, c).astype(jnp.float32)

    # Row-tile size: keep (2 big inputs) x (2 pipeline buffers) x tile bytes
    # comfortably within scoped VMEM on v5e/v6e/v7x (~<=16 MiB of buffers).
    itemsize = max(jnp.dtype(logits.dtype).itemsize,
                   jnp.dtype(soft_labels.dtype).itemsize)
    tn = (4 * 1024 * 1024) // max(1, c * itemsize)
    tn = max(8, min(512, (tn // 8) * 8))
    tn = min(tn, _round_up(n, 8))
    n_pad = _round_up(n, tn)
    grid = (n_pad // tn,)

    if n_pad != n:
        pad = ((0, n_pad - n), (0, 0))
        logits = jnp.pad(logits, pad)
        soft_labels = jnp.pad(soft_labels, pad)

    # Per-row uniforms for inverse-CDF sampling (deterministic from `key`).
    u = jax.random.uniform(key, (n_pad, 1), jnp.float32)
    n_valid = jnp.array([n], jnp.int32)

    grid_spec = pltpu.PrefetchScalarGridSpec(
        num_scalar_prefetch=1,                            # n_valid -> SMEM
        grid=grid,
        in_specs=[
            pl.BlockSpec((tn, 1), lambda i, n_ref: (i, 0)),   # u
            pl.BlockSpec((tn, c), lambda i, n_ref: (i, 0)),   # logits (native dtype)
            pl.BlockSpec((tn, c), lambda i, n_ref: (i, 0)),   # soft labels (native dtype)
            pl.BlockSpec((1, c), lambda i, n_ref: (0, 0)),    # class weights, resident
        ],
        out_specs=pl.BlockSpec((1, 1), lambda i, n_ref: (0, 0)),
        scratch_shapes=[pltpu.VMEM((1, 1), jnp.float32),      # sum(w * nll)
                        pltpu.VMEM((1, 1), jnp.float32)],     # sum(w)
    )

    out = pl.pallas_call(
        _hard_sample_loss_kernel,
        out_shape=jax.ShapeDtypeStruct((1, 1), jnp.float32),
        grid_spec=grid_spec,
        compiler_params=pltpu.CompilerParams(
            dimension_semantics=("arbitrary",)),
    )(n_valid, u, logits, soft_labels, w2d)
    return out[0, 0]


if __name__ == "__main__":
    key = jax.random.PRNGKey(0)
    k1, k2, k3, k4 = jax.random.split(key, 4)

    N, C = 8, 32
    logits = jax.random.normal(k1, (N, C), dtype=jnp.float32)
    soft_labels = jax.nn.softmax(
        jax.random.normal(k2, (N, C), dtype=jnp.float32), axis=-1)
    class_weights = jax.random.uniform(k3, (C,), dtype=jnp.float32) + 0.5

    # unweighted (default F.cross_entropy)
    loss = hard_sample_loss(logits, soft_labels, key=k4)
    loss = jax.block_until_ready(loss)

    # weighted variant (kwargs['class_weights'] path)
    loss_w = hard_sample_loss(logits, soft_labels,
                              class_weights=class_weights, key=k4)
    loss_w = jax.block_until_ready(loss_w)

    assert jnp.isfinite(loss) and jnp.isfinite(loss_w)
    print("KERNEL_OK")
</pallas_src>

<mosaic_0001>
module attributes {stable_mosaic.version = 11 : i64} {
  func.func @_hard_sample_loss_kernel(%arg0: i32, %arg1: memref<1xi32, #tpu.memory_space<smem>>, %arg2: memref<8x1xf32, #tpu.memory_space<vmem>>, %arg3: memref<8x32xf32, #tpu.memory_space<vmem>>, %arg4: memref<8x32xf32, #tpu.memory_space<vmem>>, %arg5: memref<1x32xf32, #tpu.memory_space<vmem>>, %arg6: memref<1x1xf32, #tpu.memory_space<vmem>>, %arg7: memref<1x1xf32, #tpu.memory_space<vmem>>, %arg8: memref<1x1xf32, #tpu.memory_space<vmem>>) attributes {dimension_semantics = [#tpu.dimension_semantics<arbitrary>], iteration_bounds = array<i64: 1>, scalar_prefetch = 1 : i64, scratch_operands = 2 : i64, tpu.core_type = #tpu.core_type<tc>, window_params = [{transform_indices = @transform_0, window_bounds = array<i64: 8, 1>}, {transform_indices = @transform_1, window_bounds = array<i64: 8, 32>}, {transform_indices = @transform_2, window_bounds = array<i64: 8, 32>}, {pipeline_mode = #tpu.pipeline_mode<synchronous>, transform_indices = @transform_3, window_bounds = array<i64: 1, 32>}, {pipeline_mode = #tpu.pipeline_mode<synchronous>, transform_indices = @transform_4, window_bounds = array<i64: 1, 1>}]} {
    %c0_i32 = arith.constant 0 : i32
    %0 = arith.cmpi eq, %arg0, %c0_i32 : i32
    %1 = arith.extui %0 : i1 to i32
    %c0_i32_0 = arith.constant 0 : i32
    %2 = arith.cmpi ne, %1, %c0_i32_0 : i32
    scf.if %2 {
      %cst_33 = arith.constant 0.000000e+00 : f32
      %82 = vector.broadcast %cst_33 : f32 to vector<1x1xf32>
      %c0_34 = arith.constant 0 : index
      %c0_35 = arith.constant 0 : index
      %83 = vector.load %arg7[%c0_34, %c0_35] : memref<1x1xf32, #tpu.memory_space<vmem>>, vector<1x1xf32>
      tpu.vector_store %arg7[%c0_34, %c0_35], %82 {strides = array<i32>} : memref<1x1xf32, #tpu.memory_space<vmem>>, vector<1x1xf32>,
      %cst_36 = arith.constant 0.000000e+00 : f32
      %84 = vector.broadcast %cst_36 : f32 to vector<1x1xf32>
      %c0_37 = arith.constant 0 : index
      %c0_38 = arith.constant 0 : index
      %85 = vector.load %arg8[%c0_37, %c0_38] : memref<1x1xf32, #tpu.memory_space<vmem>>, vector<1x1xf32>
      tpu.vector_store %arg8[%c0_37, %c0_38], %84 {strides = array<i32>} : memref<1x1xf32, #tpu.memory_space<vmem>>, vector<1x1xf32>,
    } else {
    }
    %c0 = arith.constant 0 : index
    %c0_1 = arith.constant 0 : index
    %3 = vector.load %arg4[%c0, %c0_1] : memref<8x32xf32, #tpu.memory_space<vmem>>, vector<8x32xf32>
    %c0_2 = arith.constant 0 : index
    %c0_3 = arith.constant 0 : index
    %4 = vector.load %arg2[%c0_2, %c0_3] : memref<8x1xf32, #tpu.memory_space<vmem>>, vector<8x1xf32>
    %cst = arith.constant 0.000000e+00 : f32
    %5 = vector.broadcast %cst : f32 to vector<8x1xf32>
    %6 = vector.extract_strided_slice %3 {offsets = [0, 0], sizes = [8, 31], strides = [1, 1]} : vector<8x32xf32> to vector<8x31xf32>
    %7 = tpu.concatenate %5, %6 in 1 : vector<8x1xf32>, vector<8x31xf32> -> vector<8x32xf32>
    %8 = arith.addf %3, %7 : vector<8x32xf32>
    %cst_4 = arith.constant 0.000000e+00 : f32
    %9 = vector.broadcast %cst_4 : f32 to vector<8x2xf32>
    %10 = vector.extract_strided_slice %8 {offsets = [0, 0], sizes = [8, 30], strides = [1, 1]} : vector<8x32xf32> to vector<8x30xf32>
    %11 = tpu.concatenate %9, %10 in 1 : vector<8x2xf32>, vector<8x30xf32> -> vector<8x32xf32>
    %12 = arith.addf %8, %11 : vector<8x32xf32>
    %cst_5 = arith.constant 0.000000e+00 : f32
    %13 = vector.broadcast %cst_5 : f32 to vector<8x4xf32>
    %14 = vector.extract_strided_slice %12 {offsets = [0, 0], sizes = [8, 28], strides = [1, 1]} : vector<8x32xf32> to vector<8x28xf32>
    %15 = tpu.concatenate %13, %14 in 1 : vector<8x4xf32>, vector<8x28xf32> -> vector<8x32xf32>
    %16 = arith.addf %12, %15 : vector<8x32xf32>
    %cst_6 = arith.constant 0.000000e+00 : f32
    %17 = vector.broadcast %cst_6 : f32 to vector<8x8xf32>
    %18 = vector.extract_strided_slice %16 {offsets = [0, 0], sizes = [8, 24], strides = [1, 1]} : vector<8x32xf32> to vector<8x24xf32>
    %19 = tpu.concatenate %17, %18 in 1 : vector<8x8xf32>, vector<8x24xf32> -> vector<8x32xf32>
    %20 = arith.addf %16, %19 : vector<8x32xf32>
    %cst_7 = arith.constant 0.000000e+00 : f32
    %21 = vector.broadcast %cst_7 : f32 to vector<8x16xf32>
    %22 = vector.extract_strided_slice %20 {offsets = [0, 0], sizes = [8, 16], strides = [1, 1]} : vector<8x32xf32> to vector<8x16xf32>
    %23 = tpu.concatenate %21, %22 in 1 : vector<8x16xf32>, vector<8x16xf32> -> vector<8x32xf32>
    %24 = arith.addf %20, %23 : vector<8x32xf32>
    %25 = vector.extract_strided_slice %24 {offsets = [0, 31], sizes = [8, 1], strides = [1, 1]} : vector<8x32xf32> to vector<8x1xf32>
    %26 = arith.mulf %4, %25 : vector<8x1xf32>
    %27 = vector.broadcast %26 : vector<8x1xf32> to vector<8x32xf32>
    %28 = arith.cmpf ole, %24, %27 : vector<8x32xf32>
    %29 = arith.extui %28 : vector<8x32xi1> to vector<8x32xi32>
    %cst_8 = arith.constant dense<0> : vector<8xi32>
    %30 = vector.multi_reduction <add>, %29, %cst_8 [1] : vector<8x32xi32> to vector<8xi32>
    %31 = vector.shape_cast %30 : vector<8xi32> to vector<8x1xi32>
    %c31_i32 = arith.constant 31 : i32
    %32 = vector.broadcast %c31_i32 : i32 to vector<8x1xi32>
    %33 = arith.minsi %31, %32 : vector<8x1xi32>
    %34 = tpu.iota {dimensions = array<i32: 1>} : vector<8x32xi32>
    %35 = vector.broadcast %33 : vector<8x1xi32> to vector<8x32xi32>
    %36 = arith.cmpi eq, %34, %35 : vector<8x32xi32>
    %c0_9 = arith.constant 0 : index
    %c0_10 = arith.constant 0 : index
    %37 = vector.load %arg3[%c0_9, %c0_10] : memref<8x32xf32, #tpu.memory_space<vmem>>, vector<8x32xf32>
    %cst_11 = arith.constant dense<0xFF800000> : vector<8xf32>
    %38 = vector.multi_reduction <maximumf>, %37, %cst_11 [1] : vector<8x32xf32> to vector<8xf32>
    %39 = vector.shape_cast %38 : vector<8xf32> to vector<8x1xf32>
    %40 = vector.broadcast %39 : vector<8x1xf32> to vector<8x32xf32>
    %41 = arith.subf %37, %40 : vector<8x32xf32>
    %42 = math.exp %41 : vector<8x32xf32>
    %cst_12 = arith.constant dense<0.000000e+00> : vector<8xf32>
    %43 = vector.multi_reduction <add>, %42, %cst_12 [1] : vector<8x32xf32> to vector<8xf32>
    %44 = vector.shape_cast %43 : vector<8xf32> to vector<8x1xf32>
    %45 = math.log %44 : vector<8x1xf32>
    %46 = arith.addf %45, %39 : vector<8x1xf32>
    %cst_13 = arith.constant 0.000000e+00 : f32
    %47 = vector.broadcast %cst_13 : f32 to vector<8x32xf32>
    %48 = arith.select %36, %37, %47 : vector<8x32xi1>, vector<8x32xf32>
    %cst_14 = arith.constant dense<0.000000e+00> : vector<8xf32>
    %49 = vector.multi_reduction <add>, %48, %cst_14 [1] : vector<8x32xf32> to vector<8xf32>
    %50 = vector.shape_cast %49 : vector<8xf32> to vector<8x1xf32>
    %51 = arith.subf %46, %50 : vector<8x1xf32>
    %c0_15 = arith.constant 0 : index
    %c0_16 = arith.constant 0 : index
    %52 = vector.load %arg5[%c0_15, %c0_16] : memref<1x32xf32, #tpu.memory_space<vmem>>, vector<1x32xf32>
    %cst_17 = arith.constant 0.000000e+00 : f32
    %53 = vector.shape_cast %52 : vector<1x32xf32> to vector<1x32xf32>
    %54 = vector.broadcast %53 : vector<1x32xf32> to vector<8x32xf32>
    %55 = vector.broadcast %cst_17 : f32 to vector<8x32xf32>
    %56 = arith.select %36, %54, %55 : vector<8x32xi1>, vector<8x32xf32>
    %cst_18 = arith.constant dense<0.000000e+00> : vector<8xf32>
    %57 = vector.multi_reduction <add>, %56, %cst_18 [1] : vector<8x32xf32> to vector<8xf32>
    %58 = vector.shape_cast %57 : vector<8xf32> to vector<8x1xf32>
    %c8_i32 = arith.constant 8 : i32
    %59 = arith.muli %arg0, %c8_i32 : i32
    %60 = tpu.iota {dimensions = array<i32: 0>} : vector<8x1xi32>
    %61 = vector.broadcast %59 : i32 to vector<8x1xi32>
    %62 = arith.addi %61, %60 : vector<8x1xi32>
    %c0_19 = arith.constant 0 : index
    %63 = memref.load %arg1[%c0_19] : memref<1xi32, #tpu.memory_space<smem>>
    %64 = vector.broadcast %63 : i32 to vector<8x1xi32>
    %65 = arith.cmpi slt, %62, %64 : vector<8x1xi32>
    %cst_20 = arith.constant 0.000000e+00 : f32
    %66 = vector.broadcast %cst_20 : f32 to vector<8x1xf32>
    %67 = arith.select %65, %58, %66 : vector<8x1xi1>, vector<8x1xf32>
    %c0_21 = arith.constant 0 : index
    %c0_22 = arith.constant 0 : index
    %68 = vector.load %arg7[%c0_21, %c0_22] : memref<1x1xf32, #tpu.memory_space<vmem>>, vector<1x1xf32>
    %69 = arith.mulf %67, %51 : vector<8x1xf32>
    %cst_23 = arith.constant dense<0.000000e+00> : vector<1xf32>
    %70 = vector.multi_reduction <add>, %69, %cst_23 [0] : vector<8x1xf32> to vector<1xf32>
    %71 = vector.shape_cast %70 : vector<1xf32> to vector<1x1xf32>
    %72 = arith.addf %68, %71 : vector<1x1xf32>
    %c0_24 = arith.constant 0 : index
    %c0_25 = arith.constant 0 : index
    %73 = vector.load %arg7[%c0_24, %c0_25] : memref<1x1xf32, #tpu.memory_space<vmem>>, vector<1x1xf32>
    tpu.vector_store %arg7[%c0_24, %c0_25], %72 {strides = array<i32>} : memref<1x1xf32, #tpu.memory_space<vmem>>, vector<1x1xf32>,
    %c0_26 = arith.constant 0 : index
    %c0_27 = arith.constant 0 : index
    %74 = vector.load %arg8[%c0_26, %c0_27] : memref<1x1xf32, #tpu.memory_space<vmem>>, vector<1x1xf32>
    %cst_28 = arith.constant dense<0.000000e+00> : vector<1xf32>
    %75 = vector.multi_reduction <add>, %67, %cst_28 [0] : vector<8x1xf32> to vector<1xf32>
    %76 = vector.shape_cast %75 : vector<1xf32> to vector<1x1xf32>
    %77 = arith.addf %74, %76 : vector<1x1xf32>
    %c0_29 = arith.constant 0 : index
    %c0_30 = arith.constant 0 : index
    %78 = vector.load %arg8[%c0_29, %c0_30] : memref<1x1xf32, #tpu.memory_space<vmem>>, vector<1x1xf32>
    tpu.vector_store %arg8[%c0_29, %c0_30], %77 {strides = array<i32>} : memref<1x1xf32, #tpu.memory_space<vmem>>, vector<1x1xf32>,
    %c0_i32_31 = arith.constant 0 : i32
    %79 = arith.cmpi eq, %arg0, %c0_i32_31 : i32
    %80 = arith.extui %79 : i1 to i32
    %c0_i32_32 = arith.constant 0 : i32
    %81 = arith.cmpi ne, %80, %c0_i32_32 : i32
    scf.if %81 {
      %c0_33 = arith.constant 0 : index
      %c0_34 = arith.constant 0 : index
      %82 = vector.load %arg7[%c0_33, %c0_34] : memref<1x1xf32, #tpu.memory_space<vmem>>, vector<1x1xf32>
      %c0_35 = arith.constant 0 : index
      %c0_36 = arith.constant 0 : index
      %83 = vector.load %arg8[%c0_35, %c0_36] : memref<1x1xf32, #tpu.memory_space<vmem>>, vector<1x1xf32>
      %84 = arith.divf %82, %83 : vector<1x1xf32>
      %c0_37 = arith.constant 0 : index
      %c0_38 = arith.constant 0 : index
      %85 = vector.load %arg6[%c0_37, %c0_38] : memref<1x1xf32, #tpu.memory_space<vmem>>, vector<1x1xf32>
      tpu.vector_store %arg6[%c0_37, %c0_38], %84 {strides = array<i32>} : memref<1x1xf32, #tpu.memory_space<vmem>>, vector<1x1xf32>,
    } else {
    }
    return
  }
  func.func @transform_0(%arg0: i32, %arg1: memref<1xi32, #tpu.memory_space<smem>>) -> (i32, i32) {
    %c0_i32 = arith.constant 0 : i32
    %c0_i32_0 = arith.constant 0 : i32
    return %arg0, %c0_i32 : i32, i32
  }
  func.func @transform_1(%arg0: i32, %arg1: memref<1xi32, #tpu.memory_space<smem>>) -> (i32, i32) {
    %c0_i32 = arith.constant 0 : i32
    %c0_i32_0 = arith.constant 0 : i32
    return %arg0, %c0_i32 : i32, i32
  }
  func.func @transform_2(%arg0: i32, %arg1: memref<1xi32, #tpu.memory_space<smem>>) -> (i32, i32) {
    %c0_i32 = arith.constant 0 : i32
    %c0_i32_0 = arith.constant 0 : i32
    return %arg0, %c0_i32 : i32, i32
  }
  func.func @transform_3(%arg0: i32, %arg1: memref<1xi32, #tpu.memory_space<smem>>) -> (i32, i32) {
    %c0_i32 = arith.constant 0 : i32
    %c0_i32_0 = arith.constant 0 : i32
    %c0_i32_1 = arith.constant 0 : i32
    return %c0_i32, %c0_i32_0 : i32, i32
  }
  func.func @transform_4(%arg0: i32, %arg1: memref<1xi32, #tpu.memory_space<smem>>) -> (i32, i32) {
    %c0_i32 = arith.constant 0 : i32
    %c0_i32_0 = arith.constant 0 : i32
    %c0_i32_1 = arith.constant 0 : i32
    return %c0_i32, %c0_i32_0 : i32, i32
  }
}

</mosaic_0001>

<llo_original>
// kernel: tpu_custom_call.1
$region0: #{tpu_custom_call.1}
  #allocation0 [shape = 'u32[]', space=smem, size = 0x4, offset = 0x4, fixed_abs, tag = 'smem constant byte address 0x4 - core index']
  #allocation1 [shape = 'u32[72,128]{1,0:T(1,128)}', space=vmem, size = 0x9000, scoped, tag = 'internal scratch']
  #allocation2 [shape = 'f32[1,1]{1,0:T(1,128)}', space=vmem, size = 0x200, scoped, tag = 'scratch operand']
  #allocation3 [shape = 'f32[1,1]{1,0:T(1,128)}', space=vmem, size = 0x200, scoped, tag = 'scratch operand']
  #allocation4 [shape = 's32[1]{0}', space=sflag, size = 0x4, scoped, tag = 'scoped memory for tpu_custom_call.1']
  #allocation5 [shape = 's32[1]{0:T(128)S(6)}', space=smem, size = 0x200, scoped, tag = 'prefetched SMEM operand 0']
  %s0 = inlined_call_operand.<no memory space> [shape: s32[1], index: 0, kind: input, shape index: {}]
  %s1 = inlined_call_operand.vmem [shape: f32[8,1], index: 1, kind: input, shape index: {}]
  %s2 = inlined_call_operand.vmem [shape: f32[8,32], index: 2, kind: input, shape index: {}]
  %s3 = inlined_call_operand.hbm [shape: f32[8,32], index: 3, kind: input, shape index: {}]
  %s4 = inlined_call_operand.vmem [shape: f32[1,32], index: 4, kind: input, shape index: {}]
  %s5 = inlined_call_operand.hbm [shape: f32[1,1], index: 5, kind: output, shape index: {}]
  %s6 = sld [smem:[#allocation0]]
  $region38: #{tpu_custom_call.1} parent=0
    _
  %s8 = ssub.s32 1, %s6
  %s9 = scalar_select 0, %s8, %s6
  %10 = sst [smem:[#allocation5]] %s0
  $region1: #{tpu_custom_call.1} parent=0
    #allocation6 [shape = 'u8[4096]{0}', space=vmem, size = 0x1000, scoped, tag = 'input window, operand 3, single buffered']
    #allocation7 [shape = 's32[1]{0}', space=sflag, size = 0x4, scoped, tag = 'scoped memory for tpu_custom_call.1']
    #allocation8 [shape = 's32[1]{0}', space=sflag, size = 0x4, scoped, tag = 'scoped memory for tpu_custom_call.1']
    #allocation9 [shape = 'u8[512]{0}', space=vmem, size = 0x400, scoped, tag = 'output window, operand 0, single buffered']
    %11 = vsyncpa [#allocation7], 0
    %12 = vsyncpa [#allocation8], 0
    // Predicated region
    $region2: #{tpu_custom_call.1} parent=1 // pred_check
      _
    $region3: #{tpu_custom_call.1} parent=1 // pred_check_branch
      %14 = sbr.rel (0) target = $region5
    $region4: #{tpu_custom_call.1} parent=1 // pred_region
      _
    $region5: #{tpu_custom_call.1} parent=1 // pred_fallthru
      _
    // Predicated region
    $region6: #{tpu_custom_call.1} parent=1 // pred_check
      _
    $region7: #{tpu_custom_call.1} parent=1 // pred_check_branch
      %16 = sbr.rel (0) target = $region9
    $region8: #{tpu_custom_call.1} parent=1 // pred_region
      _
    $region9: #{tpu_custom_call.1} parent=1 // pred_fallthru
      _
    // Predicated region
    $region10: #{tpu_custom_call.1} parent=1 // pred_check
      _
    $region11: #{tpu_custom_call.1} parent=1 // pred_check_branch
      %18 = sbr.rel (0) target = $region13
    $region12: #{tpu_custom_call.1} parent=1 // pred_region
      %20 = vsyncadd [#allocation7], 0
      %s22 = sshll.u32 %s3, 4
      %s23 = int_to_ptr.hbm [resolvable:$true] %s22
      %s24 = sshll.u32 [#allocation6], 4
      %s25 = int_to_ptr.vmem [resolvable:$true] %s24
      %27 = dma.hbm_to_vmem [thread:$0]  %s23, 128, %s25, [#allocation7]
    $region13: #{tpu_custom_call.1} parent=1 // pred_fallthru
      _
    // Predicated region
    $region14: #{tpu_custom_call.1} parent=1 // pred_check
      _
    $region15: #{tpu_custom_call.1} parent=1 // pred_check_branch
      %29 = sbr.rel (0) target = $region17
    $region16: #{tpu_custom_call.1} parent=1 // pred_region
      _
    $region17: #{tpu_custom_call.1} parent=1 // pred_fallthru
      _
    // Predicated region
    $region18: #{tpu_custom_call.1} parent=1 // pred_check
      _
    $region19: #{tpu_custom_call.1} parent=1 // pred_check_branch
      %31 = sbr.rel (0) target = $region21
    $region20: #{tpu_custom_call.1} parent=1 // pred_region
      %33 = dma.done [#allocation7], 128
    $region21: #{tpu_custom_call.1} parent=1 // pred_fallthru
      _
    %p34 = scmp.eq.s32.totalorder 0, 0
    // Predicated region
    $region22: #{tpu_custom_call.1} parent=1 // pred_check
      %p35 = pneg %p34
    $region23: #{tpu_custom_call.1} parent=1 // pred_check_branch
      %37 = sbr.rel (%p35) target = $region25
    $region24: #{tpu_custom_call.1} parent=1 // pred_region
      %vm38 = vcmask 0
      %39 = vst.msk [vmem:[#allocation2] sm:$0x1] %vm38, 0.0
      %40 = vst.msk [vmem:[#allocation3] sm:$0x1] %vm38, 0.0
    $region25: #{tpu_custom_call.1} parent=1 // pred_fallthru
      _
    %v41 = vld [vmem:[#allocation6] sm:$0xff]
    %v42 = vld [vmem:[%s1] sm:$0xff]
    %44 = vrot.lane.b32.xlu0 %v41, 1
    %v45 = vpop.permute.xlu0 %44
    %vm47 = vcmask 7168
    %v48 = vsel %vm47, 0.0, %v45
    %v49 = vadd.f32 %v41, %v48
    %51 = vrot.lane.b32.xlu0 %v49, 2
    %v52 = vpop.permute.xlu0 %51
    %vm54 = vcmask 15360
    %v55 = vsel %vm54, 0.0, %v52
    %v56 = vadd.f32 %v49, %v55
    %58 = vrot.lane.b32.xlu0 %v56, 4
    %v59 = vpop.permute.xlu0 %58
    %vm61 = vcmask 31744
    %v62 = vsel %vm61, 0.0, %v59
    %v63 = vadd.f32 %v56, %v62
    %65 = vrot.lane.b32.xlu0 %v63, 8
    %v66 = vpop.permute.xlu0 %65
    %vm68 = vcmask 64512
    %v69 = vsel %vm68, 0.0, %v66
    %v70 = vadd.f32 %v63, %v69
    %72 = vrot.lane.b32.xlu0 %v70, 16
    %v73 = vpop.permute.xlu0 %72
    %vm75 = vcmask 130048
    %v76 = vsel %vm75, 0.0, %v73
    %v77 = vadd.f32 %v70, %v76
    %79 = vrot.lane.b32.xlu0 %v77, 97
    %v80 = vpop.permute.xlu0 %79
    %v82 = vmul.f32 %v42, %v80
    %84 = vset.pattern.permute.xlu0 0
    %85 = vperm.xlu0 %84, %v82
    %v86 = vpop.permute.xlu0 %85
    %vm88 = vcmp.le.f32.partialorder %v77, %v86
    %v89 = vsel %vm88, 1, 0
    %vm90 = vcmask 261120
    %v91 = vsel %vm90, %v89, 0
    %v92 = vand.u32 %v91, 65535
    %v93 = vshrl.u32 %v91, 16
    %v94 = vcvt.s32.f32 %v92
    %v95 = vcvt.s32.f32 %v93
    %96 = vadd.xlane.f32.xlu0 %v94
    %v97 = vpop.xlane.xlu0 %96
    %98 = vadd.xlane.f32.xlu0 %v95
    %v99 = vpop.xlane.xlu0 %98
    %v100 = vcvt.f32.s32 %v97
    %v101 = vcvt.f32.s32 %v99
    %v102 = vshll.u32 %v101, 16
    %v103 = vadd.s32 %v102, %v100
    %vm104 = vcmp.lt.s32.totalorder %v103, 31
    %v105 = vsel %vm104, %v103, 31
    %v106 = vlaneseq
    %v107 = vand.u32 %v106, 127
    %vm108 = vcmp.eq.s32.totalorder %v107, %v105
    %v109 = vld [vmem:[%s2] sm:$0xff]
    %v110 = vsel %vm90, %v109, -inf
    %111 = vmax.xlane.f32.xlu0 %v110
    %v112 = vpop.xlane.xlu0 %111
    %v113 = vsub.f32 %v109, %v112
    %v114 = vmul.f32 %v113, 1.442695
    %v115 = vpow.pop %v114
    %v116 = vsel %vm90, %v115, 0.0
    %117 = vadd.xlane.f32.xlu0 %v116
    %v118 = vpop.xlane.xlu0 %117
    %v119 = vlog2.pop %v118
    %v120 = vmul.f32 %v119, 0.6931472
    %v121 = vadd.f32 %v120, %v112
    %v122 = vsel %vm108, %v109, 0.0
    %v123 = vsel %vm90, %v122, 0.0
    %124 = vadd.xlane.f32.xlu0 %v123
    %v125 = vpop.xlane.xlu0 %124
    %v126 = vsub.f32 %v121, %v125
    %v127 = vld [vmem:[%s4] sm:$0x1]
    %v129 = vperm.slane %v127, 0
    %v131 = vsel %vm108, %v129, 0.0
    %v132 = vsel %vm90, %v131, 0.0
    %133 = vadd.xlane.f32.xlu0 %v132
    %v134 = vpop.xlane.xlu0 %133
    %s135 = smul.u32 0, 8
    %v136 = vlaneseq
    %v137 = vshrl.u32 %v136, 7
    %v138 = vstv %s135
    %v139 = vadd.s32 %v138, %v137
    %s140 = sld [smem:[#allocation5]]
    %v141 = vstv %s140
    %vm142 = vcmp.lt.s32.totalorder %v139, %v141
    %v143 = vsel %vm142, %v134, 0.0
    %v144 = vld [vmem:[#allocation2] sm:$0x1]
    %v145 = vmul.f32 %v143, %v126
    %v146 = vrot.slane %v145, 4
    %v147 = vadd.f32 %v145, %v146
    %v148 = vrot.slane %v147, 2
    %v149 = vadd.f32 %v147, %v148
    %v150 = vrot.slane %v149, 1
    %v151 = vadd.f32 %v149, %v150
    %v152 = vadd.f32 %v144, %v151
    %vm153 = vcmask 0
    %154 = vst.msk [vmem:[#allocation2] sm:$0x1] %vm153, %v152
    %v155 = vld [vmem:[#allocation3] sm:$0x1]
    %v156 = vrot.slane %v143, 4
    %v157 = vadd.f32 %v143, %v156
    %v158 = vrot.slane %v157, 2
    %v159 = vadd.f32 %v157, %v158
    %v160 = vrot.slane %v159, 1
    %v161 = vadd.f32 %v159, %v160
    %v162 = vadd.f32 %v155, %v161
    %163 = vst.msk [vmem:[#allocation3] sm:$0x1] %vm153, %v162
    // Predicated region
    $region26: #{tpu_custom_call.1} parent=1 // pred_check
      %p164 = pneg %p34
    $region27: #{tpu_custom_call.1} parent=1 // pred_check_branch
      %166 = sbr.rel (%p164) target = $region29
    $region28: #{tpu_custom_call.1} parent=1 // pred_region
      %v167 = vld [vmem:[#allocation2] sm:$0x1]
      %v168 = vld [vmem:[#allocation3] sm:$0x1]
      %v169 = vrcp.pop %v168
      %v170 = vmul.f32 %v168, %v169
      %v171 = vsub.f32 1.0, %v170
      %v172 = vmul.f32 %v169, %v171
      %v173 = vadd.f32 %v169, %v172
      %vm174 = vweird.f32 %v168
      %vm175 = vweird.f32 %v169
      %vm176 = vmor %vm174, %vm175
      %v177 = vsel %vm176, %v169, %v173
      %v178 = vand.u32 2147483647, %v168
      %vm179 = vcmp.eq.f32.partialorder %v178, 8.507059e+37
      %v180 = vand.u32 %v168, 2147483648
      %v181 = vor.u32 1.1754944e-38, %v180
      %v182 = vsel %vm179, %v181, %v177
      %v183 = vmul.f32 %v167, %v182
      %184 = vst.msk [vmem:[#allocation9] sm:$0x1] %vm153, %v183
    $region29: #{tpu_custom_call.1} parent=1 // pred_fallthru
      _
    // Predicated region
    $region30: #{tpu_custom_call.1} parent=1 // pred_check
      _
    $region31: #{tpu_custom_call.1} parent=1 // pred_check_branch
      %186 = sbr.rel (0) target = $region33
    $region32: #{tpu_custom_call.1} parent=1 // pred_region
      %188 = vsyncadd [#allocation8], 0
      %s190 = sshll.u32 [#allocation9], 4
      %s191 = int_to_ptr.vmem [resolvable:$true] %s190
      %s192 = sshll.u32 %s5, 4
      %s193 = int_to_ptr.hbm [resolvable:$true] %s192
      %195 = dma.vmem_to_hbm [thread:$0]  %s191, 16, %s193, [#allocation8]
    $region33: #{tpu_custom_call.1} parent=1 // pred_fallthru
      _
    // Predicated region
    $region34: #{tpu_custom_call.1} parent=1 // pred_check
      _
    $region35: #{tpu_custom_call.1} parent=1 // pred_check_branch
      %197 = sbr.rel (0) target = $region37
    $region36: #{tpu_custom_call.1} parent=1 // pred_region
      %199 = dma.done [#allocation8], 16
    $region37: #{tpu_custom_call.1} parent=1 // pred_fallthru
      _
    %200 = vsyncpa [#allocation7], 1
    %201 = vsyncpa [#allocation8], 1

</llo_original>
